<compile_context>
chip_gen: v7x
topology: tpu7x:2x2x1
jax: 0.10.0
libtpu: 0.0.40
codegen_flags: <defaults>
</compile_context>

<pallas_src>
import jax
import jax.numpy as jnp
from jax.experimental import pallas as pl
from jax.experimental.pallas import tpu as pltpu


def _lnn_kernel(xT_ref, w1s_ref, wr_ref, mqq_ref, b1T_ref, weffT_ref,
                hqqT_ref, rhsT_ref):
    hidden = b1T_ref.shape[0]

    xT = xT_ref[...]          # (D,     TB)  batch on lanes
    w1s = w1s_ref[...]        # (2H,    D)   [W1 ; Wu]  (Wu = [0 | W1[:, :n]])
    wr = wr_ref[...]          # (n,     2H)  [W1q^T | -W1qd^T]
    mqq = mqq_ref[...]        # (n*n,   H)   Mqq[(i,j),h] = W1[h,n+i]*W1[h,n+j]
    b1T = b1T_ref[...]        # (H,     1)
    weffT = weffT_ref[...]    # (H,     1)

    # Single stacked matmul: rows 0..H-1 -> pre-activation z, rows H.. -> u,
    # where u[h, b] = sum_{j<n} W1[h, j] * qdot[b, j].
    zu = jnp.dot(w1s, xT, preferred_element_type=jnp.float32)         # (2H, TB)
    zT = zu[:hidden] + b1T                                            # (H,  TB)
    uT = zu[hidden:]                                                  # (H,  TB)

    # softplus'(z) = sigmoid(z); sigmoid goes to the EUP (free slot vs MXU/VPU).
    sT = jax.nn.sigmoid(zT)
    aT = weffT * sT                      # weff * s
    cT = aT * (1.0 - sT)                 # weff * s * (1 - s)

    # Bottom-right Hessian block, flattened row-major (i*n + j), batch on lanes.
    hqqT_ref[...] = jnp.dot(mqq, cT, preferred_element_type=jnp.float32)

    # rhs = grad[:n] - hess[n:, :n] @ qdot, fused into one (n, 2H) matmul.
    acT = jnp.concatenate([aT, cT * uT], axis=0)                      # (2H, TB)
    rhsT_ref[...] = jnp.dot(wr, acT, preferred_element_type=jnp.float32)


def lnn_qq_rhs_pallas(x, W1, b1, W2, *, tb=128):
    """Returns H_qq (bs, n, n) and rhs = g_q - H_qdq @ qdot (bs, n)."""
    x = x.astype(jnp.float32)
    W1 = W1.astype(jnp.float32)
    bs, dim = x.shape
    n = dim // 2
    hidden = W1.shape[0]

    # Batch tile: multiple of 128 keeps every load/store lane-dense and satisfies
    # the (8,128) BlockSpec constraint when the grid has more than one block.
    # (On v6e/v7x, tb=256 fills the 256-wide MXU N dimension.)
    bs_p = -(-bs // tb) * tb
    grid = bs_p // tb

    # Pad batch (zero columns are harmless; their results are discarded) and
    # transpose so the batch lives on the lane axis inside the kernel.
    x_p = x if bs_p == bs else jnp.zeros((bs_p, dim), jnp.float32).at[:bs].set(x)
    xT = x_p.T                                           # (D, bs_p)

    # Batch-independent weight matrices (loaded once; constant index maps so
    # they are not re-DMA'd across grid steps).
    w_eff = W2.astype(jnp.float32).sum(axis=0)           # (H,)
    W1q, W1qd = W1[:, :n], W1[:, n:]                     # (H, n), (H, n)
    Wu = jnp.zeros_like(W1).at[:, n:].set(W1q)           # u = Wu @ xT
    W1stack = jnp.concatenate([W1, Wu], axis=0)          # (2H, D)
    Wr = jnp.concatenate([W1q.T, -W1qd.T], axis=1)       # (n, 2H)
    W1qdT = W1qd.T                                       # (n, H)
    Mqq = (W1qdT[:, None, :] * W1qdT[None, :, :]).reshape(n * n, hidden)
    b1T = b1.astype(jnp.float32).reshape(hidden, 1)
    weffT = w_eff.reshape(hidden, 1)

    def const_spec(shape):
        return pl.BlockSpec(shape, lambda b: (0, 0))

    flops = bs_p * (2 * (2 * hidden) * dim            # stacked forward matmul
                    + 2 * n * n * hidden              # H_qq
                    + 2 * n * (2 * hidden)            # rhs
                    + 6 * hidden)                     # elementwise
    bytes_accessed = 4 * (dim * bs_p
                          + (2 * dim + 2 * n + n * n + 2) * hidden
                          + (n * n + n) * bs_p)

    hqqT, rhsT = pl.pallas_call(
        _lnn_kernel,
        out_shape=(
            jax.ShapeDtypeStruct((n * n, bs_p), jnp.float32),
            jax.ShapeDtypeStruct((n, bs_p), jnp.float32),
        ),
        grid_spec=pltpu.PrefetchScalarGridSpec(
            num_scalar_prefetch=0,
            grid=(grid,),
            in_specs=[
                pl.BlockSpec((dim, tb), lambda b: (0, b)),      # xT (batch-tiled)
                const_spec((2 * hidden, dim)),                  # [W1 ; Wu]
                const_spec((n, 2 * hidden)),                    # [W1q^T | -W1qd^T]
                const_spec((n * n, hidden)),                    # Mqq
                const_spec((hidden, 1)),                        # b1^T
                const_spec((hidden, 1)),                        # weff^T
            ],
            out_specs=[
                pl.BlockSpec((n * n, tb), lambda b: (0, b)),    # H_qq flat, batch on lanes
                pl.BlockSpec((n, tb), lambda b: (0, b)),        # rhs, batch on lanes
            ],
        ),
        compiler_params=pltpu.CompilerParams(dimension_semantics=("parallel",)),
        cost_estimate=pl.CostEstimate(flops=flops,
                                      transcendentals=bs_p * hidden,
                                      bytes_accessed=bytes_accessed),
    )(xT, W1stack, Wr, Mqq, b1T, weffT)

    hqq = hqqT.T[:bs].reshape(bs, n, n)
    rhs = rhsT.T[:bs]
    return hqq, rhs


def lnn_forward(x, W1, b1, W2, b2, *, tb=128):
    """JAX/Pallas equivalent of LNN.forward for the softplus-MLP net."""
    bs, dim = x.shape
    n = dim // 2
    hqq, rhs = lnn_qq_rhs_pallas(x, W1, b1, W2, tb=tb)
    qd = x[:, n:]
    # TODO(synk): torch.pinverse (SVD pseudo-inverse) has no Pallas equivalent and
    # batched SVD is very slow on TPU; a direct batched solve is used instead and is
    # equivalent for invertible H_qq (pinverse semantics differ only for singular blocks).
    qdd = jnp.linalg.solve(hqq, rhs[..., None])[..., 0]
    return jnp.concatenate([qd, qdd], axis=1)            # (bs, 2n)


if __name__ == "__main__":
    key = jax.random.PRNGKey(0)
    k_x, k_w1, k_b1, k_w2, k_b2 = jax.random.split(key, 5)

    bs, n, hidden = 2, 4, 32
    dim = 2 * n

    x = jax.random.normal(k_x, (bs, dim), dtype=jnp.float32)
    W1 = 0.5 * jax.random.normal(k_w1, (hidden, dim), dtype=jnp.float32)
    b1 = 0.1 * jax.random.normal(k_b1, (hidden,), dtype=jnp.float32)
    W2 = 0.5 * jax.random.normal(k_w2, (1, hidden), dtype=jnp.float32)
    b2 = 0.1 * jax.random.normal(k_b2, (1,), dtype=jnp.float32)

    out = lnn_forward(x, W1, b1, W2, b2)
    jax.block_until_ready(out)
    assert out.shape == (bs, dim)
    assert bool(jnp.all(jnp.isfinite(out)))

    # Check the kernel-computed H_qq / rhs against JAX autodiff of the Lagrangian.
    def lagrangian(qqd):
        return (W2 @ jax.nn.softplus(W1 @ qqd + b1) + b2).sum()

    g_ref = jax.vmap(jax.grad(lagrangian))(x)
    h_ref = jax.vmap(jax.hessian(lagrangian))(x)
    hqq_ref = h_ref[:, n:, n:]
    rhs_ref = g_ref[:, :n] - jnp.einsum("bij,bj->bi", h_ref[:, n:, :n], x[:, n:])

    hqq_ker, rhs_ker = lnn_qq_rhs_pallas(x, W1, b1, W2)
    assert jnp.allclose(hqq_ker, hqq_ref, atol=1e-4, rtol=1e-4)
    assert jnp.allclose(rhs_ker, rhs_ref, atol=1e-4, rtol=1e-4)

    # End-to-end check against the autodiff reference pieces (same solve on both sides).
    qdd_ref = jnp.linalg.solve(hqq_ref, rhs_ref[..., None])[..., 0]
    out_ref = jnp.concatenate([x[:, n:], qdd_ref], axis=1)
    assert jnp.allclose(out, out_ref, atol=1e-3, rtol=1e-3)

    print("KERNEL_OK")
</pallas_src>

<mosaic_0001>
module attributes {stable_mosaic.version = 11 : i64} {
  func.func @_lnn_kernel(%arg0: i32, %arg1: memref<8x128xf32, #tpu.memory_space<vmem>>, %arg2: memref<64x8xf32, #tpu.memory_space<vmem>>, %arg3: memref<4x64xf32, #tpu.memory_space<vmem>>, %arg4: memref<16x32xf32, #tpu.memory_space<vmem>>, %arg5: memref<32x1xf32, #tpu.memory_space<vmem>>, %arg6: memref<32x1xf32, #tpu.memory_space<vmem>>, %arg7: memref<16x128xf32, #tpu.memory_space<vmem>>, %arg8: memref<4x128xf32, #tpu.memory_space<vmem>>) attributes {dimension_semantics = [#tpu.dimension_semantics<parallel>], iteration_bounds = array<i64: 1>, scalar_prefetch = 0 : i64, scratch_operands = 0 : i64, tpu.core_type = #tpu.core_type<tc>, window_params = [{transform_indices = @transform_0, window_bounds = array<i64: 8, 128>}, {pipeline_mode = #tpu.pipeline_mode<synchronous>, transform_indices = @transform_1, window_bounds = array<i64: 64, 8>}, {pipeline_mode = #tpu.pipeline_mode<synchronous>, transform_indices = @transform_2, window_bounds = array<i64: 4, 64>}, {pipeline_mode = #tpu.pipeline_mode<synchronous>, transform_indices = @transform_3, window_bounds = array<i64: 16, 32>}, {pipeline_mode = #tpu.pipeline_mode<synchronous>, transform_indices = @transform_4, window_bounds = array<i64: 32, 1>}, {pipeline_mode = #tpu.pipeline_mode<synchronous>, transform_indices = @transform_5, window_bounds = array<i64: 32, 1>}, {transform_indices = @transform_6, window_bounds = array<i64: 16, 128>}, {transform_indices = @transform_7, window_bounds = array<i64: 4, 128>}]} {
    %c0 = arith.constant 0 : index
    %c0_0 = arith.constant 0 : index
    %0 = vector.load %arg1[%c0, %c0_0] : memref<8x128xf32, #tpu.memory_space<vmem>>, vector<8x128xf32>
    %c0_1 = arith.constant 0 : index
    %c0_2 = arith.constant 0 : index
    %1 = vector.load %arg2[%c0_1, %c0_2] : memref<64x8xf32, #tpu.memory_space<vmem>>, vector<64x8xf32>
    %c0_3 = arith.constant 0 : index
    %c0_4 = arith.constant 0 : index
    %2 = vector.load %arg3[%c0_3, %c0_4] : memref<4x64xf32, #tpu.memory_space<vmem>>, vector<4x64xf32>
    %c0_5 = arith.constant 0 : index
    %c0_6 = arith.constant 0 : index
    %3 = vector.load %arg4[%c0_5, %c0_6] : memref<16x32xf32, #tpu.memory_space<vmem>>, vector<16x32xf32>
    %c0_7 = arith.constant 0 : index
    %c0_8 = arith.constant 0 : index
    %4 = vector.load %arg5[%c0_7, %c0_8] : memref<32x1xf32, #tpu.memory_space<vmem>>, vector<32x1xf32>
    %c0_9 = arith.constant 0 : index
    %c0_10 = arith.constant 0 : index
    %5 = vector.load %arg6[%c0_9, %c0_10] : memref<32x1xf32, #tpu.memory_space<vmem>>, vector<32x1xf32>
    %cst = arith.constant dense<0.000000e+00> : vector<64x128xf32>
    %6 = tpu.matmul %1, %0, %cst {dimension_numbers = #tpu.dot_dimension_numbers<[1], [0], [0], [1], [0, 0, 1, 1], [], []>} : vector<64x8xf32>, vector<8x128xf32>, vector<64x128xf32> -> vector<64x128xf32>
    %7 = vector.extract_strided_slice %6 {offsets = [0, 0], sizes = [32, 128], strides = [1, 1]} : vector<64x128xf32> to vector<32x128xf32>
    %8 = vector.broadcast %4 : vector<32x1xf32> to vector<32x128xf32>
    %9 = arith.addf %7, %8 : vector<32x128xf32>
    %10 = vector.extract_strided_slice %6 {offsets = [32, 0], sizes = [32, 128], strides = [1, 1]} : vector<64x128xf32> to vector<32x128xf32>
    %11 = arith.negf %9 : vector<32x128xf32>
    %12 = math.exp %11 : vector<32x128xf32>
    %cst_11 = arith.constant 1.000000e+00 : f32
    %13 = vector.broadcast %cst_11 : f32 to vector<32x128xf32>
    %14 = arith.addf %13, %12 : vector<32x128xf32>
    %15 = arith.divf %13, %14 : vector<32x128xf32>
    %16 = vector.broadcast %5 : vector<32x1xf32> to vector<32x128xf32>
    %17 = arith.mulf %16, %15 : vector<32x128xf32>
    %cst_12 = arith.constant 1.000000e+00 : f32
    %18 = vector.broadcast %cst_12 : f32 to vector<32x128xf32>
    %19 = arith.subf %18, %15 : vector<32x128xf32>
    %20 = arith.mulf %17, %19 : vector<32x128xf32>
    %cst_13 = arith.constant dense<0.000000e+00> : vector<16x128xf32>
    %21 = tpu.matmul %3, %20, %cst_13 {dimension_numbers = #tpu.dot_dimension_numbers<[1], [0], [0], [1], [0, 0, 1, 1], [], []>} : vector<16x32xf32>, vector<32x128xf32>, vector<16x128xf32> -> vector<16x128xf32>
    %c0_14 = arith.constant 0 : index
    %c0_15 = arith.constant 0 : index
    %22 = vector.load %arg7[%c0_14, %c0_15] : memref<16x128xf32, #tpu.memory_space<vmem>>, vector<16x128xf32>
    tpu.vector_store %arg7[%c0_14, %c0_15], %21 {strides = array<i32>} : memref<16x128xf32, #tpu.memory_space<vmem>>, vector<16x128xf32>,
    %23 = arith.mulf %20, %10 : vector<32x128xf32>
    %24 = tpu.concatenate %17, %23 in 0 : vector<32x128xf32>, vector<32x128xf32> -> vector<64x128xf32>
    %cst_16 = arith.constant dense<0.000000e+00> : vector<4x128xf32>
    %25 = tpu.matmul %2, %24, %cst_16 {dimension_numbers = #tpu.dot_dimension_numbers<[1], [0], [0], [1], [0, 0, 1, 1], [], []>} : vector<4x64xf32>, vector<64x128xf32>, vector<4x128xf32> -> vector<4x128xf32>
    %c0_17 = arith.constant 0 : index
    %c0_18 = arith.constant 0 : index
    %26 = vector.load %arg8[%c0_17, %c0_18] : memref<4x128xf32, #tpu.memory_space<vmem>>, vector<4x128xf32>
    tpu.vector_store %arg8[%c0_17, %c0_18], %25 {strides = array<i32>} : memref<4x128xf32, #tpu.memory_space<vmem>>, vector<4x128xf32>,
    return
  }
  func.func @transform_0(%arg0: i32) -> (i32, i32) {
    %c0_i32 = arith.constant 0 : i32
    %c0_i32_0 = arith.constant 0 : i32
    return %c0_i32, %arg0 : i32, i32
  }
  func.func @transform_1(%arg0: i32) -> (i32, i32) {
    %c0_i32 = arith.constant 0 : i32
    %c0_i32_0 = arith.constant 0 : i32
    %c0_i32_1 = arith.constant 0 : i32
    return %c0_i32, %c0_i32_0 : i32, i32
  }
  func.func @transform_2(%arg0: i32) -> (i32, i32) {
    %c0_i32 = arith.constant 0 : i32
    %c0_i32_0 = arith.constant 0 : i32
    %c0_i32_1 = arith.constant 0 : i32
    return %c0_i32, %c0_i32_0 : i32, i32
  }
  func.func @transform_3(%arg0: i32) -> (i32, i32) {
    %c0_i32 = arith.constant 0 : i32
    %c0_i32_0 = arith.constant 0 : i32
    %c0_i32_1 = arith.constant 0 : i32
    return %c0_i32, %c0_i32_0 : i32, i32
  }
  func.func @transform_4(%arg0: i32) -> (i32, i32) {
    %c0_i32 = arith.constant 0 : i32
    %c0_i32_0 = arith.constant 0 : i32
    %c0_i32_1 = arith.constant 0 : i32
    return %c0_i32, %c0_i32_0 : i32, i32
  }
  func.func @transform_5(%arg0: i32) -> (i32, i32) {
    %c0_i32 = arith.constant 0 : i32
    %c0_i32_0 = arith.constant 0 : i32
    %c0_i32_1 = arith.constant 0 : i32
    return %c0_i32, %c0_i32_0 : i32, i32
  }
  func.func @transform_6(%arg0: i32) -> (i32, i32) {
    %c0_i32 = arith.constant 0 : i32
    %c0_i32_0 = arith.constant 0 : i32
    return %c0_i32, %arg0 : i32, i32
  }
  func.func @transform_7(%arg0: i32) -> (i32, i32) {
    %c0_i32 = arith.constant 0 : i32
    %c0_i32_0 = arith.constant 0 : i32
    return %c0_i32, %arg0 : i32, i32
  }
}

</mosaic_0001>

<llo_original>
// kernel: tpu_custom_call.1
$region0: #{tpu_custom_call.1}
  #allocation0 [shape = 'u32[]', space=smem, size = 0x4, offset = 0x4, fixed_abs, tag = 'smem constant byte address 0x4 - core index']
  #allocation1 [shape = 'u32[144,128]{1,0:T(1,128)}', space=vmem, size = 0x12000, scoped, tag = 'internal scratch']
  %s0 = inlined_call_operand.vmem [shape: f32[8,128], index: 0, kind: input, shape index: {}]
  %s1 = inlined_call_operand.vmem [shape: f32[64,8], index: 1, kind: input, shape index: {}]
  %s2 = inlined_call_operand.vmem [shape: f32[4,64], index: 2, kind: input, shape index: {}]
  %s3 = inlined_call_operand.vmem [shape: f32[16,32], index: 3, kind: input, shape index: {}]
  %s4 = inlined_call_operand.vmem [shape: f32[32,1], index: 4, kind: input, shape index: {}]
  %s5 = inlined_call_operand.vmem [shape: f32[32,1], index: 5, kind: input, shape index: {}]
  %s6 = inlined_call_operand.hbm [shape: f32[16,128], index: 6, kind: output, shape index: {0}]
  %s7 = inlined_call_operand.hbm [shape: f32[4,128], index: 7, kind: output, shape index: {1}]
  %8 = xla_tuple %s6, %s7
  %s9 = sld [smem:[#allocation0]]
  $region42: #{tpu_custom_call.1} parent=0
    _
  %s11 = ssub.s32 1, %s9
  %s12 = scalar_select 0, %s11, %s9
  $region1: #{tpu_custom_call.1} parent=0
    #allocation2 [shape = 'u8[8192]{0}', space=vmem, size = 0x2000, scoped, tag = 'output window, operand 0, single buffered']
    #allocation3 [shape = 's32[1]{0}', space=sflag, size = 0x4, scoped, tag = 'scoped memory for tpu_custom_call.1']
    #allocation4 [shape = 'u8[2048]{0}', space=vmem, size = 0x800, scoped, tag = 'output window, operand 1, single buffered']
    #allocation5 [shape = 's32[1]{0}', space=sflag, size = 0x4, scoped, tag = 'scoped memory for tpu_custom_call.1']
    %13 = vsyncpa [#allocation3], 0
    %14 = vsyncpa [#allocation5], 0
    // Predicated region
    $region2: #{tpu_custom_call.1} parent=1 // pred_check
      _
    $region3: #{tpu_custom_call.1} parent=1 // pred_check_branch
      %16 = sbr.rel (0) target = $region5
    $region4: #{tpu_custom_call.1} parent=1 // pred_region
      _
    $region5: #{tpu_custom_call.1} parent=1 // pred_fallthru
      _
    // Predicated region
    $region6: #{tpu_custom_call.1} parent=1 // pred_check
      _
    $region7: #{tpu_custom_call.1} parent=1 // pred_check_branch
      %18 = sbr.rel (0) target = $region9
    $region8: #{tpu_custom_call.1} parent=1 // pred_region
      _
    $region9: #{tpu_custom_call.1} parent=1 // pred_fallthru
      _
    // Predicated region
    $region10: #{tpu_custom_call.1} parent=1 // pred_check
      _
    $region11: #{tpu_custom_call.1} parent=1 // pred_check_branch
      %20 = sbr.rel (0) target = $region13
    $region12: #{tpu_custom_call.1} parent=1 // pred_region
      _
    $region13: #{tpu_custom_call.1} parent=1 // pred_fallthru
      _
    // Predicated region
    $region14: #{tpu_custom_call.1} parent=1 // pred_check
      _
    $region15: #{tpu_custom_call.1} parent=1 // pred_check_branch
      %22 = sbr.rel (0) target = $region17
    $region16: #{tpu_custom_call.1} parent=1 // pred_region
      _
    $region17: #{tpu_custom_call.1} parent=1 // pred_fallthru
      _
    // Predicated region
    $region18: #{tpu_custom_call.1} parent=1 // pred_check
      _
    $region19: #{tpu_custom_call.1} parent=1 // pred_check_branch
      %24 = sbr.rel (0) target = $region21
    $region20: #{tpu_custom_call.1} parent=1 // pred_region
      _
    $region21: #{tpu_custom_call.1} parent=1 // pred_fallthru
      _
    // Predicated region
    $region22: #{tpu_custom_call.1} parent=1 // pred_check
      _
    $region23: #{tpu_custom_call.1} parent=1 // pred_check_branch
      %26 = sbr.rel (0) target = $region25
    $region24: #{tpu_custom_call.1} parent=1 // pred_region
      _
    $region25: #{tpu_custom_call.1} parent=1 // pred_fallthru
      _
    %v27 = vld [vmem:[%s0] sm:$0xff]
    %v28 = vld [vmem:[%s1] sm:$0xff]
    %v29 = vld [vmem:[%s1 + $0x8] sm:$0xff]
    %v30 = vld [vmem:[%s1 + $0x10] sm:$0xff]
    %v31 = vld [vmem:[%s1 + $0x18] sm:$0xff]
    %v32 = vld [vmem:[%s1 + $0x20] sm:$0xff]
    %v33 = vld [vmem:[%s1 + $0x28] sm:$0xff]
    %v34 = vld [vmem:[%s1 + $0x30] sm:$0xff]
    %v35 = vld [vmem:[%s1 + $0x38] sm:$0xff]
    %v36 = vld [vmem:[%s2] sm:$0xf]
    %v37 = vld [vmem:[%s3] sm:$0xff]
    %v38 = vld [vmem:[%s3 + $0x8] sm:$0xff]
    %v39 = vld [vmem:[%s4] sm:$0xff]
    %v40 = vld [vmem:[%s4 + $0x8] sm:$0xff]
    %v41 = vld [vmem:[%s4 + $0x10] sm:$0xff]
    %v42 = vld [vmem:[%s4 + $0x18] sm:$0xff]
    %v43 = vld [vmem:[%s5] sm:$0xff]
    %v44 = vld [vmem:[%s5 + $0x8] sm:$0xff]
    %v45 = vld [vmem:[%s5 + $0x10] sm:$0xff]
    %v46 = vld [vmem:[%s5 + $0x18] sm:$0xff]
    %vm47 = vcmask 64512
    %v49 = vsel %vm47, %v28, 0
    %v52 = vsel %vm47, %v29, 0
    %v55 = vsel %vm47, %v30, 0
    %v58 = vsel %vm47, %v31, 0
    %v61 = vsel %vm47, %v32, 0
    %v64 = vsel %vm47, %v33, 0
    %v67 = vsel %vm47, %v34, 0
    %v70 = vsel %vm47, %v35, 0
    %72 = vmatprep.subr.mxu0 0.0
    %73 = vmatpush1.msra.mxu0 %v27
    %74 = vmatprep.subr.mxu0 0.0
    %75 = vmatpush1.msra.mxu0 0.0
    %76 = vmatprep.subr.mxu0 0.0
    %77 = vmatpush1.msra.mxu0 0.0
    %78 = vmatprep.subr.mxu0 0.0
    %79 = vmatpush1.msra.mxu0 0.0
    %80 = vmatprep.subr.mxu0 0.0
    %81 = vmatpush1.msra.mxu0 0.0
    %82 = vmatprep.subr.mxu0 0.0
    %83 = vmatpush1.msra.mxu0 0.0
    %84 = vmatprep.subr.mxu0 0.0
    %85 = vmatpush1.msra.mxu0 0.0
    %86 = vmatprep.subr.mxu0 0.0
    %87 = vmatpush1.msra.mxu0 0.0
    %88 = vmatprep.subr.mxu0 0.0
    %89 = vmatpush1.msra.mxu0 0.0
    %90 = vmatprep.subr.mxu0 0.0
    %91 = vmatpush1.msra.mxu0 0.0
    %92 = vmatprep.subr.mxu0 0.0
    %93 = vmatpush1.msra.mxu0 0.0
    %94 = vmatprep.subr.mxu0 0.0
    %95 = vmatpush1.msra.mxu0 0.0
    %96 = vmatprep.subr.mxu0 0.0
    %97 = vmatpush1.msra.mxu0 0.0
    %98 = vmatprep.subr.mxu0 0.0
    %99 = vmatpush1.msra.mxu0 0.0
    %100 = vmatprep.subr.mxu0 0.0
    %101 = vmatpush1.msra.mxu0 0.0
    %102 = vmatprep.subr.mxu0 0.0
    %103 = vmatpush1.msra.mxu0 0.0
    %104 = vmatprep.subr.mxu0 0.0
    %105 = vmatpush1.msra.mxu0 0.0
    %106 = vmatprep.subr.mxu0 0.0
    %107 = vmatpush1.msra.mxu0 0.0
    %108 = vmatprep.subr.mxu0 0.0
    %109 = vmatpush1.msra.mxu0 0.0
    %110 = vmatprep.subr.mxu0 0.0
    %111 = vmatpush1.msra.mxu0 0.0
    %112 = vmatprep.subr.mxu0 0.0
    %113 = vmatpush1.msra.mxu0 0.0
    %114 = vmatprep.subr.mxu0 0.0
    %115 = vmatpush1.msra.mxu0 0.0
    %116 = vmatprep.subr.mxu0 0.0
    %117 = vmatpush1.msra.mxu0 0.0
    %118 = vmatprep.subr.mxu0 0.0
    %119 = vmatpush1.msra.mxu0 0.0
    %120 = vmatprep.subr.mxu0 0.0
    %121 = vmatpush1.msra.mxu0 0.0
    %122 = vmatprep.subr.mxu0 0.0
    %123 = vmatpush1.msra.mxu0 0.0
    %124 = vmatprep.subr.mxu0 0.0
    %125 = vmatpush1.msra.mxu0 0.0
    %126 = vmatprep.subr.mxu0 0.0
    %127 = vmatpush1.msra.mxu0 0.0
    %128 = vmatprep.subr.mxu0 0.0
    %129 = vmatpush1.msra.mxu0 0.0
    %130 = vmatprep.subr.mxu0 0.0
    %131 = vmatpush1.msra.mxu0 0.0
    %132 = vmatprep.subr.mxu0 0.0
    %133 = vmatpush1.msra.mxu0 0.0
    %134 = vmatprep.subr.mxu0 0.0
    %135 = vmatpush1.msra.mxu0 0.0
    %136 = vmatprep.mubr.f32.mxu0 0.0
    %137 = vmatmul.mubr.f32.gmra.mrb[0].mxu0 %v49
    %v138 = vpop.f32.mrb[0].mxu0
    %v139 = vadd.f32 0.0, %v138
    %v140 = vpop.f32.mrb[0].mxu0
    %141 = vmatprep.mubr.f32.mxu0 0.0
    %142 = vmatmul.mubr.f32.gmra.mrb[0].mxu0 %v52
    %v143 = vpop.f32.mrb[0].mxu0
    %v144 = vadd.f32 0.0, %v143
    %v145 = vpop.f32.mrb[0].mxu0
    %146 = vmatprep.mubr.f32.mxu0 0.0
    %147 = vmatmul.mubr.f32.gmra.mrb[0].mxu0 %v55
    %v148 = vpop.f32.mrb[0].mxu0
    %v149 = vadd.f32 0.0, %v148
    %v150 = vpop.f32.mrb[0].mxu0
    %151 = vmatprep.mubr.f32.mxu0 0.0
    %152 = vmatmul.mubr.f32.gmra.mrb[0].mxu0 %v58
    %v153 = vpop.f32.mrb[0].mxu0
    %v154 = vadd.f32 0.0, %v153
    %v155 = vpop.f32.mrb[0].mxu0
    %156 = vmatprep.mubr.f32.mxu0 0.0
    %157 = vmatmul.mubr.f32.gmra.mrb[0].mxu0 %v61
    %v158 = vpop.f32.mrb[0].mxu0
    %v159 = vadd.f32 0.0, %v158
    %v160 = vpop.f32.mrb[0].mxu0
    %161 = vmatprep.mubr.f32.mxu0 0.0
    %162 = vmatmul.mubr.f32.gmra.mrb[0].mxu0 %v64
    %v163 = vpop.f32.mrb[0].mxu0
    %v164 = vadd.f32 0.0, %v163
    %v165 = vpop.f32.mrb[0].mxu0
    %166 = vmatprep.mubr.f32.mxu0 0.0
    %167 = vmatmul.mubr.f32.gmra.mrb[0].mxu0 %v67
    %v168 = vpop.f32.mrb[0].mxu0
    %v169 = vadd.f32 0.0, %v168
    %v170 = vpop.f32.mrb[0].mxu0
    %171 = vmatprep.mubr.f32.mxu0 0.0
    %172 = vmatmul.mubr.f32.gmra.mrb[0].mxu0 %v70
    %v173 = vpop.f32.mrb[0].mxu0
    %v174 = vadd.f32 0.0, %v173
    %v175 = vpop.f32.mrb[0].mxu0
    %176 = vdwg.mxu0
    %178 = vset.pattern.permute.xlu0 0
    %179 = vperm.xlu0 %178, %v39
    %v180 = vpop.permute.xlu0 %179
    %183 = vset.pattern.permute.xlu0 0
    %184 = vperm.xlu0 %183, %v40
    %v185 = vpop.permute.xlu0 %184
    %188 = vset.pattern.permute.xlu0 0
    %189 = vperm.xlu0 %188, %v41
    %v190 = vpop.permute.xlu0 %189
    %193 = vset.pattern.permute.xlu0 0
    %194 = vperm.xlu0 %193, %v42
    %v195 = vpop.permute.xlu0 %194
    %v197 = vadd.f32 %v139, %v180
    %v198 = vadd.f32 %v144, %v185
    %v199 = vadd.f32 %v149, %v190
    %v200 = vadd.f32 %v154, %v195
    %v201 = vxor.u32 %v197, 2147483648
    %v202 = vxor.u32 %v198, 2147483648
    %v203 = vxor.u32 %v199, 2147483648
    %v204 = vxor.u32 %v200, 2147483648
    %v205 = vmul.f32 %v201, 1.442695
    %v206 = vpow.pop %v205
    %v207 = vmul.f32 %v202, 1.442695
    %v208 = vpow.pop %v207
    %v209 = vmul.f32 %v203, 1.442695
    %v210 = vpow.pop %v209
    %v211 = vmul.f32 %v204, 1.442695
    %v212 = vpow.pop %v211
    %v213 = vadd.f32 %v206, 1.0
    %v214 = vadd.f32 %v208, 1.0
    %v215 = vadd.f32 %v210, 1.0
    %v216 = vadd.f32 %v212, 1.0
    %v217 = vrcp.pop %v213
    %v218 = vmul.f32 1.0, %v217
    %v219 = vrcp.pop %v214
    %v220 = vmul.f32 1.0, %v219
    %v221 = vrcp.pop %v215
    %v222 = vmul.f32 1.0, %v221
    %v223 = vrcp.pop %v216
    %v224 = vmul.f32 1.0, %v223
    %226 = vset.pattern.permute.xlu0 0
    %227 = vperm.xlu0 %226, %v43
    %v228 = vpop.permute.xlu0 %227
    %231 = vset.pattern.permute.xlu0 0
    %232 = vperm.xlu0 %231, %v44
    %v233 = vpop.permute.xlu0 %232
    %236 = vset.pattern.permute.xlu0 0
    %237 = vperm.xlu0 %236, %v45
    %v238 = vpop.permute.xlu0 %237
    %241 = vset.pattern.permute.xlu0 0
    %242 = vperm.xlu0 %241, %v46
    %v243 = vpop.permute.xlu0 %242
    %v245 = vmul.f32 %v228, %v218
    %v246 = vmul.f32 %v233, %v220
    %v247 = vmul.f32 %v238, %v222
    %v248 = vmul.f32 %v243, %v224
    %v249 = vsub.f32 1.0, %v218
    %v250 = vsub.f32 1.0, %v220
    %v251 = vsub.f32 1.0, %v222
    %v252 = vsub.f32 1.0, %v224
    %v253 = vmul.f32 %v245, %v249
    %v254 = vmul.f32 %v246, %v250
    %v255 = vmul.f32 %v247, %v251
    %v256 = vmul.f32 %v248, %v252
    %vm257 = vcmask 261120
    %v259 = vsel %vm257, %v37, 0
    %v262 = vsel %vm257, %v38, 0
    %264 = vmatprep.subr.mxu0 0.0
    %265 = vmatpush1.msra.mxu0 %v253
    %266 = vmatprep.subr.mxu0 0.0
    %267 = vmatpush1.msra.mxu0 %v254
    %268 = vmatprep.subr.mxu0 0.0
    %269 = vmatpush1.msra.mxu0 %v255
    %270 = vmatprep.subr.mxu0 0.0
    %271 = vmatpush1.msra.mxu0 %v256
    %272 = vmatprep.subr.mxu0 0.0
    %273 = vmatpush1.msra.mxu0 0.0
    %274 = vmatprep.subr.mxu0 0.0
    %275 = vmatpush1.msra.mxu0 0.0
    %276 = vmatprep.subr.mxu0 0.0
    %277 = vmatpush1.msra.mxu0 0.0
    %278 = vmatprep.subr.mxu0 0.0
    %279 = vmatpush1.msra.mxu0 0.0
    %280 = vmatprep.subr.mxu0 0.0
    %281 = vmatpush1.msra.mxu0 0.0
    %282 = vmatprep.subr.mxu0 0.0
    %283 = vmatpush1.msra.mxu0 0.0
    %284 = vmatprep.subr.mxu0 0.0
    %285 = vmatpush1.msra.mxu0 0.0
    %286 = vmatprep.subr.mxu0 0.0
    %287 = vmatpush1.msra.mxu0 0.0
    %288 = vmatprep.subr.mxu0 0.0
    %289 = vmatpush1.msra.mxu0 0.0
    %290 = vmatprep.subr.mxu0 0.0
    %291 = vmatpush1.msra.mxu0 0.0
    %292 = vmatprep.subr.mxu0 0.0
    %293 = vmatpush1.msra.mxu0 0.0
    %294 = vmatprep.subr.mxu0 0.0
    %295 = vmatpush1.msra.mxu0 0.0
    %296 = vmatprep.subr.mxu0 0.0
    %297 = vmatpush1.msra.mxu0 0.0
    %298 = vmatprep.subr.mxu0 0.0
    %299 = vmatpush1.msra.mxu0 0.0
    %300 = vmatprep.subr.mxu0 0.0
    %301 = vmatpush1.msra.mxu0 0.0
    %302 = vmatprep.subr.mxu0 0.0
    %303 = vmatpush1.msra.mxu0 0.0
    %304 = vmatprep.subr.mxu0 0.0
    %305 = vmatpush1.msra.mxu0 0.0
    %306 = vmatprep.subr.mxu0 0.0
    %307 = vmatpush1.msra.mxu0 0.0
    %308 = vmatprep.subr.mxu0 0.0
    %309 = vmatpush1.msra.mxu0 0.0
    %310 = vmatprep.subr.mxu0 0.0
    %311 = vmatpush1.msra.mxu0 0.0
    %312 = vmatprep.subr.mxu0 0.0
    %313 = vmatpush1.msra.mxu0 0.0
    %314 = vmatprep.subr.mxu0 0.0
    %315 = vmatpush1.msra.mxu0 0.0
    %316 = vmatprep.subr.mxu0 0.0
    %317 = vmatpush1.msra.mxu0 0.0
    %318 = vmatprep.subr.mxu0 0.0
    %319 = vmatpush1.msra.mxu0 0.0
    %320 = vmatprep.subr.mxu0 0.0
    %321 = vmatpush1.msra.mxu0 0.0
    %322 = vmatprep.subr.mxu0 0.0
    %323 = vmatpush1.msra.mxu0 0.0
    %324 = vmatprep.subr.mxu0 0.0
    %325 = vmatpush1.msra.mxu0 0.0
    %326 = vmatprep.subr.mxu0 0.0
    %327 = vmatpush1.msra.mxu0 0.0
    %328 = vmatprep.mubr.f32.mxu0 0.0
    %329 = vmatmul.mubr.f32.gmra.mrb[0].mxu0 %v259
    %v330 = vpop.f32.mrb[0].mxu0
    %v331 = vadd.f32 0.0, %v330
    %v332 = vpop.f32.mrb[0].mxu0
    %333 = vmatprep.mubr.f32.mxu0 0.0
    %334 = vmatmul.mubr.f32.gmra.mrb[0].mxu0 %v262
    %v335 = vpop.f32.mrb[0].mxu0
    %v336 = vadd.f32 0.0, %v335
    %v337 = vpop.f32.mrb[0].mxu0
    %338 = vdwg.mxu0
    %339 = vst [vmem:[#allocation2] sm:$0xff] %v331
    %340 = vst [vmem:[#allocation2 + $0x8] sm:$0xff] %v336
    %v341 = vmul.f32 %v253, %v159
    %v342 = vmul.f32 %v254, %v164
    %v343 = vmul.f32 %v255, %v169
    %v344 = vmul.f32 %v256, %v174
    %vm345 = vcmask 523264
    %v347 = vsel %vm345, %v36, 0
    %349 = vmatprep.subr.mxu0 0.0
    %350 = vmatpush1.msra.mxu0 %v245
    %351 = vmatprep.subr.mxu0 0.0
    %352 = vmatpush1.msra.mxu0 %v246
    %353 = vmatprep.subr.mxu0 0.0
    %354 = vmatpush1.msra.mxu0 %v247
    %355 = vmatprep.subr.mxu0 0.0
    %356 = vmatpush1.msra.mxu0 %v248
    %357 = vmatprep.subr.mxu0 0.0
    %358 = vmatpush1.msra.mxu0 %v341
    %359 = vmatprep.subr.mxu0 0.0
    %360 = vmatpush1.msra.mxu0 %v342
    %361 = vmatprep.subr.mxu0 0.0
    %362 = vmatpush1.msra.mxu0 %v343
    %363 = vmatprep.subr.mxu0 0.0
    %364 = vmatpush1.msra.mxu0 %v344
    %365 = vmatprep.subr.mxu0 0.0
    %366 = vmatpush1.msra.mxu0 0.0
    %367 = vmatprep.subr.mxu0 0.0
    %368 = vmatpush1.msra.mxu0 0.0
    %369 = vmatprep.subr.mxu0 0.0
    %370 = vmatpush1.msra.mxu0 0.0
    %371 = vmatprep.subr.mxu0 0.0
    %372 = vmatpush1.msra.mxu0 0.0
    %373 = vmatprep.subr.mxu0 0.0
    %374 = vmatpush1.msra.mxu0 0.0
    %375 = vmatprep.subr.mxu0 0.0
    %376 = vmatpush1.msra.mxu0 0.0
    %377 = vmatprep.subr.mxu0 0.0
    %378 = vmatpush1.msra.mxu0 0.0
    %379 = vmatprep.subr.mxu0 0.0
    %380 = vmatpush1.msra.mxu0 0.0
    %381 = vmatprep.subr.mxu0 0.0
    %382 = vmatpush1.msra.mxu0 0.0
    %383 = vmatprep.subr.mxu0 0.0
    %384 = vmatpush1.msra.mxu0 0.0
    %385 = vmatprep.subr.mxu0 0.0
    %386 = vmatpush1.msra.mxu0 0.0
    %387 = vmatprep.subr.mxu0 0.0
    %388 = vmatpush1.msra.mxu0 0.0
    %389 = vmatprep.subr.mxu0 0.0
    %390 = vmatpush1.msra.mxu0 0.0
    %391 = vmatprep.subr.mxu0 0.0
    %392 = vmatpush1.msra.mxu0 0.0
    %393 = vmatprep.subr.mxu0 0.0
    %394 = vmatpush1.msra.mxu0 0.0
    %395 = vmatprep.subr.mxu0 0.0
    %396 = vmatpush1.msra.mxu0 0.0
    %397 = vmatprep.subr.mxu0 0.0
    %398 = vmatpush1.msra.mxu0 0.0
    %399 = vmatprep.subr.mxu0 0.0
    %400 = vmatpush1.msra.mxu0 0.0
    %401 = vmatprep.subr.mxu0 0.0
    %402 = vmatpush1.msra.mxu0 0.0
    %403 = vmatprep.subr.mxu0 0.0
    %404 = vmatpush1.msra.mxu0 0.0
    %405 = vmatprep.subr.mxu0 0.0
    %406 = vmatpush1.msra.mxu0 0.0
    %407 = vmatprep.subr.mxu0 0.0
    %408 = vmatpush1.msra.mxu0 0.0
    %409 = vmatprep.subr.mxu0 0.0
    %410 = vmatpush1.msra.mxu0 0.0
    %411 = vmatprep.subr.mxu0 0.0
    %412 = vmatpush1.msra.mxu0 0.0
    %413 = vmatprep.mubr.f32.mxu0 0.0
    %414 = vmatmul.mubr.f32.gmra.mrb[0].mxu0 %v347
    %v415 = vpop.f32.mrb[0].mxu0
    %v416 = vadd.f32 0.0, %v415
    %v417 = vpop.f32.mrb[0].mxu0
    %418 = vdwg.mxu0
    %419 = vst [vmem:[#allocation4] sm:$0xf] %v416
    // Predicated region
    $region26: #{tpu_custom_call.1} parent=1 // pred_check
      _
    $region27: #{tpu_custom_call.1} parent=1 // pred_check_branch
      %421 = sbr.rel (0) target = $region29
    $region28: #{tpu_custom_call.1} parent=1 // pred_region
      %s423 = ssub.s32 256, 256
      %424 = vsyncadd [#allocation3], %s423
      %s425 = sshll.u32 [#allocation2], 4
      %s426 = int_to_ptr.vmem [resolvable:$true] %s425
      %431 = dma.vmem_to_hbm [thread:$0]  %s426, 256, %s6, [#allocation3], 128, 128, 8
    $region29: #{tpu_custom_call.1} parent=1 // pred_fallthru
      _
    // Predicated region
    $region30: #{tpu_custom_call.1} parent=1 // pred_check
      _
    $region31: #{tpu_custom_call.1} parent=1 // pred_check_branch
      %433 = sbr.rel (0) target = $region33
    $region32: #{tpu_custom_call.1} parent=1 // pred_region
      %s435 = ssub.s32 64, 64
      %436 = vsyncadd [#allocation5], %s435
      %s438 = sshll.u32 [#allocation4], 4
      %s439 = int_to_ptr.vmem [resolvable:$true] %s438
      %441 = dma.vmem_to_hbm [thread:$0]  %s439, 64, %s7, [#allocation5]
    $region33: #{tpu_custom_call.1} parent=1 // pred_fallthru
      _
    // Predicated region
    $region34: #{tpu_custom_call.1} parent=1 // pred_check
      _
    $region35: #{tpu_custom_call.1} parent=1 // pred_check_branch
      %443 = sbr.rel (0) target = $region37
    $region36: #{tpu_custom_call.1} parent=1 // pred_region
      %444 = dma.done [#allocation3], 256
    $region37: #{tpu_custom_call.1} parent=1 // pred_fallthru
      _
    // Predicated region
    $region38: #{tpu_custom_call.1} parent=1 // pred_check
      _
    $region39: #{tpu_custom_call.1} parent=1 // pred_check_branch
      %446 = sbr.rel (0) target = $region41
    $region40: #{tpu_custom_call.1} parent=1 // pred_region
      %447 = dma.done [#allocation5], 64
    $region41: #{tpu_custom_call.1} parent=1 // pred_fallthru
      _
    %448 = vsyncpa [#allocation3], 1
    %449 = vsyncpa [#allocation5], 1

</llo_original>
